<compile_context>
chip_gen: v6e
topology: v6e:2x2x1
jax: 0.10.0
libtpu: 0.0.40
codegen_flags: <defaults>
</compile_context>

<pallas_src>
import jax
import jax.numpy as jnp
from jax.experimental import pallas as pl
from jax.experimental.pallas import tpu as pltpu

INPUT_SIZE = 28
HIDDEN = 64
OUT_DIM = 10
OUT_PAD = 128   # lane-padded head output width (unmasked HBM store)
KP_IN = 32      # padded contraction width for the input projection (28 + bias col + pad)


def _lstm_head_kernel(x_ref, wih_ref, whh_ref, wout_ref, bout_ref, out_ref, xp_ref):
    B = out_ref.shape[0]            # padded batch (multiple of 8)
    T = x_ref.shape[0] // B         # static sequence length
    H = whh_ref.shape[0]            # hidden size (64); gates are (B, 4*H)

    # One-shot input projection for ALL timesteps (bias already folded into
    # wih via the ones column appended to x) — a single MXU call that is off
    # the serial critical path.  Stored bf16 to keep the scratch small.
    xp_ref[...] = jnp.dot(x_ref[...], wih_ref[...],
                          preferred_element_type=jnp.float32).astype(xp_ref.dtype)

    # Hoist the W_hh load out of the serial loop (8 bf16 vregs held live).
    whh = whh_ref[...]

    def step(t, carry):
        h, c = carry
        row = pl.multiple_of(t * B, B)
        gates = (xp_ref[pl.ds(row, B), :].astype(jnp.float32)
                 + jnp.dot(h.astype(jnp.bfloat16), whh,
                           preferred_element_type=jnp.float32))
        # PyTorch gate order [i, f, g, o].  64-wide slices of a VMEM-resident
        # value are XLU lane-selects and hide under the MXU latency.
        i_g = jax.nn.sigmoid(gates[:, 0 * H:1 * H])
        f_g = jax.nn.sigmoid(gates[:, 1 * H:2 * H])
        g_g = jnp.tanh(gates[:, 2 * H:3 * H])
        o_g = jax.nn.sigmoid(gates[:, 3 * H:4 * H])
        c_new = f_g * c + i_g * g_g          # f32 elementwise (v5e has no bf16 VPU/EUP)
        h_new = o_g * jnp.tanh(c_new)
        return h_new, c_new

    h0 = jnp.zeros((B, H), jnp.float32)
    c0 = jnp.zeros((B, H), jnp.float32)
    h, _ = jax.lax.fori_loop(0, T, step, (h0, c0),
                             unroll=True if T <= 16 else 8)

    # Classifier head on the last hidden state; lane-padded (B, 128) slab so
    # the HBM store is an unmasked vst (sliced back to OUT_DIM in the wrapper).
    out_ref[...] = (jnp.dot(h.astype(jnp.bfloat16), wout_ref[...],
                            preferred_element_type=jnp.float32)
                    + bout_ref[...]).astype(out_ref.dtype)


def rnn_forward(x, params):
    """x: (B, T, INPUT_SIZE) float32 (batch_first, PyTorch convention)."""
    B, T, IN = x.shape
    assert IN == INPUT_SIZE
    assert T >= 1

    f32, bf16 = jnp.float32, jnp.bfloat16

    # ---- one-time weight prep (outside the kernel, off the serial path) ----
    # PyTorch LSTM weights: w_ih (4H, IN), w_hh (4H, H); gate order [i, f, g, o].
    wih_t = jnp.transpose(params["w_ih"].astype(f32))                 # (IN, 4H)
    bias = (params["b_ih"] + params["b_hh"]).astype(f32)              # (4H,)
    # Fold bias into the input projection (ones column in x, bias row here),
    # then zero-pad the contraction dim to KP_IN for clean sublane tiling.
    wih_aug = jnp.concatenate([wih_t, bias[None, :]], axis=0)         # (IN+1, 4H)
    wih_aug = jnp.pad(wih_aug, ((0, KP_IN - (IN + 1)), (0, 0))).astype(bf16)

    # Recurrent weight: (H, 4H) bf16 — NO gate-width padding (one MXU weight
    # tile per step on v6e/v7x).
    whh_t = jnp.transpose(params["w_hh"].astype(f32)).astype(bf16)    # (H, 4H)

    wout_t = jnp.transpose(params["w_out"].astype(f32))               # (H, OUT)
    wout_p = jnp.pad(wout_t, ((0, 0), (0, OUT_PAD - OUT_DIM))).astype(bf16)
    bout_p = jnp.pad(params["b_out"].astype(f32)[None, :],
                     ((0, 0), (0, OUT_PAD - OUT_DIM)))                # (1, OUT_PAD) f32

    # ---- batch pad to a multiple of 8 (sublane alignment inside the loop) ----
    Bp = ((B + 7) // 8) * 8
    if Bp != B:
        x = jnp.pad(x, ((0, Bp - B), (0, 0), (0, 0)))

    # Time-major flatten + ones column (bias fold) + K-pad; a single XLA copy
    # outside the serial critical path.
    x_tm = jnp.transpose(x.astype(f32), (1, 0, 2)).reshape(T * Bp, IN)
    x_aug = jnp.concatenate(
        [x_tm,
         jnp.ones((T * Bp, 1), f32),
         jnp.zeros((T * Bp, KP_IN - (IN + 1)), f32)],
        axis=1).astype(bf16)                                          # (T*Bp, KP_IN)

    vmem = pl.BlockSpec(memory_space=pltpu.MemorySpace.VMEM)
    out_padded = pl.pallas_call(
        _lstm_head_kernel,
        out_shape=jax.ShapeDtypeStruct((Bp, OUT_PAD), jnp.float32),
        in_specs=[vmem, vmem, vmem, vmem, vmem],
        out_specs=vmem,
        scratch_shapes=[pltpu.VMEM((T * Bp, 4 * HIDDEN), jnp.bfloat16)],  # x_proj
    )(x_aug, wih_aug, whh_t, wout_p, bout_p)

    return out_padded[:B, :OUT_DIM]


def rnn_forward_ref(x, params):
    """Pure-JAX f32 reference of the same forward pass (correctness check)."""
    w_ih, w_hh, b_ih, b_hh, w_out, b_out = (
        params["w_ih"], params["w_hh"], params["b_ih"], params["b_hh"],
        params["w_out"], params["b_out"])
    B, T, IN = x.shape
    h = jnp.zeros((B, HIDDEN), jnp.float32)
    c = jnp.zeros((B, HIDDEN), jnp.float32)

    def step(carry, x_t):
        h, c = carry
        gates = x_t @ w_ih.T + h @ w_hh.T + b_ih + b_hh
        i = jax.nn.sigmoid(gates[:, 0 * HIDDEN:1 * HIDDEN])
        f = jax.nn.sigmoid(gates[:, 1 * HIDDEN:2 * HIDDEN])
        g = jnp.tanh(gates[:, 2 * HIDDEN:3 * HIDDEN])
        o = jax.nn.sigmoid(gates[:, 3 * HIDDEN:4 * HIDDEN])
        c = f * c + i * g
        h = o * jnp.tanh(c)
        return (h, c), None

    (h, c), _ = jax.lax.scan(step, (h, c), jnp.transpose(x, (1, 0, 2)))
    return h @ w_out.T + b_out


def init_params(key):
    """Deterministic parameter init with PyTorch-like shapes."""
    ks = jax.random.split(key, 6)
    scale = 1.0 / jnp.sqrt(HIDDEN)
    u = lambda k, shape: jax.random.uniform(k, shape, jnp.float32, -scale, scale)
    return {
        "w_ih": u(ks[0], (4 * HIDDEN, INPUT_SIZE)),
        "w_hh": u(ks[1], (4 * HIDDEN, HIDDEN)),
        "b_ih": u(ks[2], (4 * HIDDEN,)),
        "b_hh": u(ks[3], (4 * HIDDEN,)),
        "w_out": u(ks[4], (OUT_DIM, HIDDEN)),
        "b_out": u(ks[5], (OUT_DIM,)),
    }


if __name__ == "__main__":
    key = jax.random.PRNGKey(0)
    pkey, xkey = jax.random.split(key)
    params = init_params(pkey)

    B, T = 8, 8
    x = jax.random.normal(xkey, (B, T, INPUT_SIZE), jnp.float32)

    out = jax.block_until_ready(rnn_forward(x, params))
    ref = jax.block_until_ready(rnn_forward_ref(x, params))

    assert out.shape == (B, OUT_DIM)
    # Tolerance loosened vs. the pure-f32 reference because the MXU operands
    # (W_ih, W_hh, W_out, x, h, x_proj) are bf16 per the perf review; the bf16
    # W_hh rounding compounds over T timesteps.  Elementwise math stays f32.
    max_err = jnp.max(jnp.abs(out - ref))
    assert jnp.allclose(out, ref, atol=5e-2, rtol=1e-2), f"max abs err {max_err}"

    print("KERNEL_OK")
</pallas_src>

<mosaic_0001>
module attributes {stable_mosaic.version = 11 : i64} {
  func.func @_lstm_head_kernel(%arg0: memref<64x32xbf16, #tpu.memory_space<vmem>>, %arg1: memref<32x256xbf16, #tpu.memory_space<vmem>>, %arg2: memref<64x256xbf16, #tpu.memory_space<vmem>>, %arg3: memref<64x128xbf16, #tpu.memory_space<vmem>>, %arg4: memref<1x128xf32, #tpu.memory_space<vmem>>, %arg5: memref<8x128xf32, #tpu.memory_space<vmem>>, %arg6: memref<64x256xbf16, #tpu.memory_space<vmem>>) attributes {dimension_semantics = [], scalar_prefetch = 0 : i64, scratch_operands = 1 : i64, tpu.core_type = #tpu.core_type<tc>} {
    %c0 = arith.constant 0 : index
    %c0_0 = arith.constant 0 : index
    %0 = vector.load %arg0[%c0, %c0_0] : memref<64x32xbf16, #tpu.memory_space<vmem>>, vector<64x32xbf16>
    %c0_1 = arith.constant 0 : index
    %c0_2 = arith.constant 0 : index
    %1 = vector.load %arg1[%c0_1, %c0_2] : memref<32x256xbf16, #tpu.memory_space<vmem>>, vector<32x256xbf16>
    %cst = arith.constant dense<0.000000e+00> : vector<64x256xf32>
    %2 = tpu.matmul %0, %1, %cst {dimension_numbers = #tpu.dot_dimension_numbers<[1], [0], [0], [1], [0, 0, 1, 1], [], []>} : vector<64x32xbf16>, vector<32x256xbf16>, vector<64x256xf32> -> vector<64x256xf32>
    %3 = arith.truncf %2 : vector<64x256xf32> to vector<64x256xbf16>
    %c0_3 = arith.constant 0 : index
    %c0_4 = arith.constant 0 : index
    %4 = vector.load %arg6[%c0_3, %c0_4] : memref<64x256xbf16, #tpu.memory_space<vmem>>, vector<64x256xbf16>
    tpu.vector_store %arg6[%c0_3, %c0_4], %3 {strides = array<i32>} : memref<64x256xbf16, #tpu.memory_space<vmem>>, vector<64x256xbf16>,
    %c0_5 = arith.constant 0 : index
    %c0_6 = arith.constant 0 : index
    %5 = vector.load %arg2[%c0_5, %c0_6] : memref<64x256xbf16, #tpu.memory_space<vmem>>, vector<64x256xbf16>
    %cst_7 = arith.constant 0.000000e+00 : f32
    %6 = vector.broadcast %cst_7 : f32 to vector<8x64xf32>
    %cst_8 = arith.constant 0.000000e+00 : f32
    %7 = vector.broadcast %cst_8 : f32 to vector<8x64xf32>
    %c0_i32 = arith.constant 0 : i32
    %c8_i32 = arith.constant 8 : i32
    %8 = arith.muli %c0_i32, %c8_i32 : i32
    %9 = tpu.assume_multiple %8, 8 : i32
    %10 = arith.index_cast %9 : i32 to index
    %c0_9 = arith.constant 0 : index
    %11 = vector.load %arg6[%10, %c0_9] : memref<64x256xbf16, #tpu.memory_space<vmem>>, vector<8x256xbf16>
    %12 = arith.extf %11 : vector<8x256xbf16> to vector<8x256xf32>
    %13 = arith.truncf %6 : vector<8x64xf32> to vector<8x64xbf16>
    %cst_10 = arith.constant dense<0.000000e+00> : vector<8x256xf32>
    %14 = tpu.matmul %13, %5, %cst_10 {dimension_numbers = #tpu.dot_dimension_numbers<[1], [0], [0], [1], [0, 0, 1, 1], [], []>} : vector<8x64xbf16>, vector<64x256xbf16>, vector<8x256xf32> -> vector<8x256xf32>
    %15 = arith.addf %12, %14 : vector<8x256xf32>
    %16 = vector.extract_strided_slice %15 {offsets = [0, 0], sizes = [8, 64], strides = [1, 1]} : vector<8x256xf32> to vector<8x64xf32>
    %17 = arith.negf %16 : vector<8x64xf32>
    %18 = math.exp %17 : vector<8x64xf32>
    %cst_11 = arith.constant 1.000000e+00 : f32
    %19 = vector.broadcast %cst_11 : f32 to vector<8x64xf32>
    %20 = arith.addf %19, %18 : vector<8x64xf32>
    %21 = arith.divf %19, %20 : vector<8x64xf32>
    %22 = vector.extract_strided_slice %15 {offsets = [0, 64], sizes = [8, 64], strides = [1, 1]} : vector<8x256xf32> to vector<8x64xf32>
    %23 = arith.negf %22 : vector<8x64xf32>
    %24 = math.exp %23 : vector<8x64xf32>
    %cst_12 = arith.constant 1.000000e+00 : f32
    %25 = vector.broadcast %cst_12 : f32 to vector<8x64xf32>
    %26 = arith.addf %25, %24 : vector<8x64xf32>
    %27 = arith.divf %25, %26 : vector<8x64xf32>
    %28 = vector.extract_strided_slice %15 {offsets = [0, 128], sizes = [8, 64], strides = [1, 1]} : vector<8x256xf32> to vector<8x64xf32>
    %29 = math.tanh %28 : vector<8x64xf32>
    %30 = vector.extract_strided_slice %15 {offsets = [0, 192], sizes = [8, 64], strides = [1, 1]} : vector<8x256xf32> to vector<8x64xf32>
    %31 = arith.negf %30 : vector<8x64xf32>
    %32 = math.exp %31 : vector<8x64xf32>
    %cst_13 = arith.constant 1.000000e+00 : f32
    %33 = vector.broadcast %cst_13 : f32 to vector<8x64xf32>
    %34 = arith.addf %33, %32 : vector<8x64xf32>
    %35 = arith.divf %33, %34 : vector<8x64xf32>
    %36 = arith.mulf %27, %7 : vector<8x64xf32>
    %37 = arith.mulf %21, %29 : vector<8x64xf32>
    %38 = arith.addf %36, %37 : vector<8x64xf32>
    %39 = math.tanh %38 : vector<8x64xf32>
    %40 = arith.mulf %35, %39 : vector<8x64xf32>
    %c1_i32 = arith.constant 1 : i32
    %c8_i32_14 = arith.constant 8 : i32
    %41 = arith.muli %c1_i32, %c8_i32_14 : i32
    %42 = tpu.assume_multiple %41, 8 : i32
    %43 = arith.index_cast %42 : i32 to index
    %c0_15 = arith.constant 0 : index
    %44 = vector.load %arg6[%43, %c0_15] : memref<64x256xbf16, #tpu.memory_space<vmem>>, vector<8x256xbf16>
    %45 = arith.extf %44 : vector<8x256xbf16> to vector<8x256xf32>
    %46 = arith.truncf %40 : vector<8x64xf32> to vector<8x64xbf16>
    %cst_16 = arith.constant dense<0.000000e+00> : vector<8x256xf32>
    %47 = tpu.matmul %46, %5, %cst_16 {dimension_numbers = #tpu.dot_dimension_numbers<[1], [0], [0], [1], [0, 0, 1, 1], [], []>} : vector<8x64xbf16>, vector<64x256xbf16>, vector<8x256xf32> -> vector<8x256xf32>
    %48 = arith.addf %45, %47 : vector<8x256xf32>
    %49 = vector.extract_strided_slice %48 {offsets = [0, 0], sizes = [8, 64], strides = [1, 1]} : vector<8x256xf32> to vector<8x64xf32>
    %50 = arith.negf %49 : vector<8x64xf32>
    %51 = math.exp %50 : vector<8x64xf32>
    %cst_17 = arith.constant 1.000000e+00 : f32
    %52 = vector.broadcast %cst_17 : f32 to vector<8x64xf32>
    %53 = arith.addf %52, %51 : vector<8x64xf32>
    %54 = arith.divf %52, %53 : vector<8x64xf32>
    %55 = vector.extract_strided_slice %48 {offsets = [0, 64], sizes = [8, 64], strides = [1, 1]} : vector<8x256xf32> to vector<8x64xf32>
    %56 = arith.negf %55 : vector<8x64xf32>
    %57 = math.exp %56 : vector<8x64xf32>
    %cst_18 = arith.constant 1.000000e+00 : f32
    %58 = vector.broadcast %cst_18 : f32 to vector<8x64xf32>
    %59 = arith.addf %58, %57 : vector<8x64xf32>
    %60 = arith.divf %58, %59 : vector<8x64xf32>
    %61 = vector.extract_strided_slice %48 {offsets = [0, 128], sizes = [8, 64], strides = [1, 1]} : vector<8x256xf32> to vector<8x64xf32>
    %62 = math.tanh %61 : vector<8x64xf32>
    %63 = vector.extract_strided_slice %48 {offsets = [0, 192], sizes = [8, 64], strides = [1, 1]} : vector<8x256xf32> to vector<8x64xf32>
    %64 = arith.negf %63 : vector<8x64xf32>
    %65 = math.exp %64 : vector<8x64xf32>
    %cst_19 = arith.constant 1.000000e+00 : f32
    %66 = vector.broadcast %cst_19 : f32 to vector<8x64xf32>
    %67 = arith.addf %66, %65 : vector<8x64xf32>
    %68 = arith.divf %66, %67 : vector<8x64xf32>
    %69 = arith.mulf %60, %38 : vector<8x64xf32>
    %70 = arith.mulf %54, %62 : vector<8x64xf32>
    %71 = arith.addf %69, %70 : vector<8x64xf32>
    %72 = math.tanh %71 : vector<8x64xf32>
    %73 = arith.mulf %68, %72 : vector<8x64xf32>
    %c2_i32 = arith.constant 2 : i32
    %c8_i32_20 = arith.constant 8 : i32
    %74 = arith.muli %c2_i32, %c8_i32_20 : i32
    %75 = tpu.assume_multiple %74, 8 : i32
    %76 = arith.index_cast %75 : i32 to index
    %c0_21 = arith.constant 0 : index
    %77 = vector.load %arg6[%76, %c0_21] : memref<64x256xbf16, #tpu.memory_space<vmem>>, vector<8x256xbf16>
    %78 = arith.extf %77 : vector<8x256xbf16> to vector<8x256xf32>
    %79 = arith.truncf %73 : vector<8x64xf32> to vector<8x64xbf16>
    %cst_22 = arith.constant dense<0.000000e+00> : vector<8x256xf32>
    %80 = tpu.matmul %79, %5, %cst_22 {dimension_numbers = #tpu.dot_dimension_numbers<[1], [0], [0], [1], [0, 0, 1, 1], [], []>} : vector<8x64xbf16>, vector<64x256xbf16>, vector<8x256xf32> -> vector<8x256xf32>
    %81 = arith.addf %78, %80 : vector<8x256xf32>
    %82 = vector.extract_strided_slice %81 {offsets = [0, 0], sizes = [8, 64], strides = [1, 1]} : vector<8x256xf32> to vector<8x64xf32>
    %83 = arith.negf %82 : vector<8x64xf32>
    %84 = math.exp %83 : vector<8x64xf32>
    %cst_23 = arith.constant 1.000000e+00 : f32
    %85 = vector.broadcast %cst_23 : f32 to vector<8x64xf32>
    %86 = arith.addf %85, %84 : vector<8x64xf32>
    %87 = arith.divf %85, %86 : vector<8x64xf32>
    %88 = vector.extract_strided_slice %81 {offsets = [0, 64], sizes = [8, 64], strides = [1, 1]} : vector<8x256xf32> to vector<8x64xf32>
    %89 = arith.negf %88 : vector<8x64xf32>
    %90 = math.exp %89 : vector<8x64xf32>
    %cst_24 = arith.constant 1.000000e+00 : f32
    %91 = vector.broadcast %cst_24 : f32 to vector<8x64xf32>
    %92 = arith.addf %91, %90 : vector<8x64xf32>
    %93 = arith.divf %91, %92 : vector<8x64xf32>
    %94 = vector.extract_strided_slice %81 {offsets = [0, 128], sizes = [8, 64], strides = [1, 1]} : vector<8x256xf32> to vector<8x64xf32>
    %95 = math.tanh %94 : vector<8x64xf32>
    %96 = vector.extract_strided_slice %81 {offsets = [0, 192], sizes = [8, 64], strides = [1, 1]} : vector<8x256xf32> to vector<8x64xf32>
    %97 = arith.negf %96 : vector<8x64xf32>
    %98 = math.exp %97 : vector<8x64xf32>
    %cst_25 = arith.constant 1.000000e+00 : f32
    %99 = vector.broadcast %cst_25 : f32 to vector<8x64xf32>
    %100 = arith.addf %99, %98 : vector<8x64xf32>
    %101 = arith.divf %99, %100 : vector<8x64xf32>
    %102 = arith.mulf %93, %71 : vector<8x64xf32>
    %103 = arith.mulf %87, %95 : vector<8x64xf32>
    %104 = arith.addf %102, %103 : vector<8x64xf32>
    %105 = math.tanh %104 : vector<8x64xf32>
    %106 = arith.mulf %101, %105 : vector<8x64xf32>
    %c3_i32 = arith.constant 3 : i32
    %c8_i32_26 = arith.constant 8 : i32
    %107 = arith.muli %c3_i32, %c8_i32_26 : i32
    %108 = tpu.assume_multiple %107, 8 : i32
    %109 = arith.index_cast %108 : i32 to index
    %c0_27 = arith.constant 0 : index
    %110 = vector.load %arg6[%109, %c0_27] : memref<64x256xbf16, #tpu.memory_space<vmem>>, vector<8x256xbf16>
    %111 = arith.extf %110 : vector<8x256xbf16> to vector<8x256xf32>
    %112 = arith.truncf %106 : vector<8x64xf32> to vector<8x64xbf16>
    %cst_28 = arith.constant dense<0.000000e+00> : vector<8x256xf32>
    %113 = tpu.matmul %112, %5, %cst_28 {dimension_numbers = #tpu.dot_dimension_numbers<[1], [0], [0], [1], [0, 0, 1, 1], [], []>} : vector<8x64xbf16>, vector<64x256xbf16>, vector<8x256xf32> -> vector<8x256xf32>
    %114 = arith.addf %111, %113 : vector<8x256xf32>
    %115 = vector.extract_strided_slice %114 {offsets = [0, 0], sizes = [8, 64], strides = [1, 1]} : vector<8x256xf32> to vector<8x64xf32>
    %116 = arith.negf %115 : vector<8x64xf32>
    %117 = math.exp %116 : vector<8x64xf32>
    %cst_29 = arith.constant 1.000000e+00 : f32
    %118 = vector.broadcast %cst_29 : f32 to vector<8x64xf32>
    %119 = arith.addf %118, %117 : vector<8x64xf32>
    %120 = arith.divf %118, %119 : vector<8x64xf32>
    %121 = vector.extract_strided_slice %114 {offsets = [0, 64], sizes = [8, 64], strides = [1, 1]} : vector<8x256xf32> to vector<8x64xf32>
    %122 = arith.negf %121 : vector<8x64xf32>
    %123 = math.exp %122 : vector<8x64xf32>
    %cst_30 = arith.constant 1.000000e+00 : f32
    %124 = vector.broadcast %cst_30 : f32 to vector<8x64xf32>
    %125 = arith.addf %124, %123 : vector<8x64xf32>
    %126 = arith.divf %124, %125 : vector<8x64xf32>
    %127 = vector.extract_strided_slice %114 {offsets = [0, 128], sizes = [8, 64], strides = [1, 1]} : vector<8x256xf32> to vector<8x64xf32>
    %128 = math.tanh %127 : vector<8x64xf32>
    %129 = vector.extract_strided_slice %114 {offsets = [0, 192], sizes = [8, 64], strides = [1, 1]} : vector<8x256xf32> to vector<8x64xf32>
    %130 = arith.negf %129 : vector<8x64xf32>
    %131 = math.exp %130 : vector<8x64xf32>
    %cst_31 = arith.constant 1.000000e+00 : f32
    %132 = vector.broadcast %cst_31 : f32 to vector<8x64xf32>
    %133 = arith.addf %132, %131 : vector<8x64xf32>
    %134 = arith.divf %132, %133 : vector<8x64xf32>
    %135 = arith.mulf %126, %104 : vector<8x64xf32>
    %136 = arith.mulf %120, %128 : vector<8x64xf32>
    %137 = arith.addf %135, %136 : vector<8x64xf32>
    %138 = math.tanh %137 : vector<8x64xf32>
    %139 = arith.mulf %134, %138 : vector<8x64xf32>
    %c4_i32 = arith.constant 4 : i32
    %c8_i32_32 = arith.constant 8 : i32
    %140 = arith.muli %c4_i32, %c8_i32_32 : i32
    %141 = tpu.assume_multiple %140, 8 : i32
    %142 = arith.index_cast %141 : i32 to index
    %c0_33 = arith.constant 0 : index
    %143 = vector.load %arg6[%142, %c0_33] : memref<64x256xbf16, #tpu.memory_space<vmem>>, vector<8x256xbf16>
    %144 = arith.extf %143 : vector<8x256xbf16> to vector<8x256xf32>
    %145 = arith.truncf %139 : vector<8x64xf32> to vector<8x64xbf16>
    %cst_34 = arith.constant dense<0.000000e+00> : vector<8x256xf32>
    %146 = tpu.matmul %145, %5, %cst_34 {dimension_numbers = #tpu.dot_dimension_numbers<[1], [0], [0], [1], [0, 0, 1, 1], [], []>} : vector<8x64xbf16>, vector<64x256xbf16>, vector<8x256xf32> -> vector<8x256xf32>
    %147 = arith.addf %144, %146 : vector<8x256xf32>
    %148 = vector.extract_strided_slice %147 {offsets = [0, 0], sizes = [8, 64], strides = [1, 1]} : vector<8x256xf32> to vector<8x64xf32>
    %149 = arith.negf %148 : vector<8x64xf32>
    %150 = math.exp %149 : vector<8x64xf32>
    %cst_35 = arith.constant 1.000000e+00 : f32
    %151 = vector.broadcast %cst_35 : f32 to vector<8x64xf32>
    %152 = arith.addf %151, %150 : vector<8x64xf32>
    %153 = arith.divf %151, %152 : vector<8x64xf32>
    %154 = vector.extract_strided_slice %147 {offsets = [0, 64], sizes = [8, 64], strides = [1, 1]} : vector<8x256xf32> to vector<8x64xf32>
    %155 = arith.negf %154 : vector<8x64xf32>
    %156 = math.exp %155 : vector<8x64xf32>
    %cst_36 = arith.constant 1.000000e+00 : f32
    %157 = vector.broadcast %cst_36 : f32 to vector<8x64xf32>
    %158 = arith.addf %157, %156 : vector<8x64xf32>
    %159 = arith.divf %157, %158 : vector<8x64xf32>
    %160 = vector.extract_strided_slice %147 {offsets = [0, 128], sizes = [8, 64], strides = [1, 1]} : vector<8x256xf32> to vector<8x64xf32>
    %161 = math.tanh %160 : vector<8x64xf32>
    %162 = vector.extract_strided_slice %147 {offsets = [0, 192], sizes = [8, 64], strides = [1, 1]} : vector<8x256xf32> to vector<8x64xf32>
    %163 = arith.negf %162 : vector<8x64xf32>
    %164 = math.exp %163 : vector<8x64xf32>
    %cst_37 = arith.constant 1.000000e+00 : f32
    %165 = vector.broadcast %cst_37 : f32 to vector<8x64xf32>
    %166 = arith.addf %165, %164 : vector<8x64xf32>
    %167 = arith.divf %165, %166 : vector<8x64xf32>
    %168 = arith.mulf %159, %137 : vector<8x64xf32>
    %169 = arith.mulf %153, %161 : vector<8x64xf32>
    %170 = arith.addf %168, %169 : vector<8x64xf32>
    %171 = math.tanh %170 : vector<8x64xf32>
    %172 = arith.mulf %167, %171 : vector<8x64xf32>
    %c5_i32 = arith.constant 5 : i32
    %c8_i32_38 = arith.constant 8 : i32
    %173 = arith.muli %c5_i32, %c8_i32_38 : i32
    %174 = tpu.assume_multiple %173, 8 : i32
    %175 = arith.index_cast %174 : i32 to index
    %c0_39 = arith.constant 0 : index
    %176 = vector.load %arg6[%175, %c0_39] : memref<64x256xbf16, #tpu.memory_space<vmem>>, vector<8x256xbf16>
    %177 = arith.extf %176 : vector<8x256xbf16> to vector<8x256xf32>
    %178 = arith.truncf %172 : vector<8x64xf32> to vector<8x64xbf16>
    %cst_40 = arith.constant dense<0.000000e+00> : vector<8x256xf32>
    %179 = tpu.matmul %178, %5, %cst_40 {dimension_numbers = #tpu.dot_dimension_numbers<[1], [0], [0], [1], [0, 0, 1, 1], [], []>} : vector<8x64xbf16>, vector<64x256xbf16>, vector<8x256xf32> -> vector<8x256xf32>
    %180 = arith.addf %177, %179 : vector<8x256xf32>
    %181 = vector.extract_strided_slice %180 {offsets = [0, 0], sizes = [8, 64], strides = [1, 1]} : vector<8x256xf32> to vector<8x64xf32>
    %182 = arith.negf %181 : vector<8x64xf32>
    %183 = math.exp %182 : vector<8x64xf32>
    %cst_41 = arith.constant 1.000000e+00 : f32
    %184 = vector.broadcast %cst_41 : f32 to vector<8x64xf32>
    %185 = arith.addf %184, %183 : vector<8x64xf32>
    %186 = arith.divf %184, %185 : vector<8x64xf32>
    %187 = vector.extract_strided_slice %180 {offsets = [0, 64], sizes = [8, 64], strides = [1, 1]} : vector<8x256xf32> to vector<8x64xf32>
    %188 = arith.negf %187 : vector<8x64xf32>
    %189 = math.exp %188 : vector<8x64xf32>
    %cst_42 = arith.constant 1.000000e+00 : f32
    %190 = vector.broadcast %cst_42 : f32 to vector<8x64xf32>
    %191 = arith.addf %190, %189 : vector<8x64xf32>
    %192 = arith.divf %190, %191 : vector<8x64xf32>
    %193 = vector.extract_strided_slice %180 {offsets = [0, 128], sizes = [8, 64], strides = [1, 1]} : vector<8x256xf32> to vector<8x64xf32>
    %194 = math.tanh %193 : vector<8x64xf32>
    %195 = vector.extract_strided_slice %180 {offsets = [0, 192], sizes = [8, 64], strides = [1, 1]} : vector<8x256xf32> to vector<8x64xf32>
    %196 = arith.negf %195 : vector<8x64xf32>
    %197 = math.exp %196 : vector<8x64xf32>
    %cst_43 = arith.constant 1.000000e+00 : f32
    %198 = vector.broadcast %cst_43 : f32 to vector<8x64xf32>
    %199 = arith.addf %198, %197 : vector<8x64xf32>
    %200 = arith.divf %198, %199 : vector<8x64xf32>
    %201 = arith.mulf %192, %170 : vector<8x64xf32>
    %202 = arith.mulf %186, %194 : vector<8x64xf32>
    %203 = arith.addf %201, %202 : vector<8x64xf32>
    %204 = math.tanh %203 : vector<8x64xf32>
    %205 = arith.mulf %200, %204 : vector<8x64xf32>
    %c6_i32 = arith.constant 6 : i32
    %c8_i32_44 = arith.constant 8 : i32
    %206 = arith.muli %c6_i32, %c8_i32_44 : i32
    %207 = tpu.assume_multiple %206, 8 : i32
    %208 = arith.index_cast %207 : i32 to index
    %c0_45 = arith.constant 0 : index
    %209 = vector.load %arg6[%208, %c0_45] : memref<64x256xbf16, #tpu.memory_space<vmem>>, vector<8x256xbf16>
    %210 = arith.extf %209 : vector<8x256xbf16> to vector<8x256xf32>
    %211 = arith.truncf %205 : vector<8x64xf32> to vector<8x64xbf16>
    %cst_46 = arith.constant dense<0.000000e+00> : vector<8x256xf32>
    %212 = tpu.matmul %211, %5, %cst_46 {dimension_numbers = #tpu.dot_dimension_numbers<[1], [0], [0], [1], [0, 0, 1, 1], [], []>} : vector<8x64xbf16>, vector<64x256xbf16>, vector<8x256xf32> -> vector<8x256xf32>
    %213 = arith.addf %210, %212 : vector<8x256xf32>
    %214 = vector.extract_strided_slice %213 {offsets = [0, 0], sizes = [8, 64], strides = [1, 1]} : vector<8x256xf32> to vector<8x64xf32>
    %215 = arith.negf %214 : vector<8x64xf32>
    %216 = math.exp %215 : vector<8x64xf32>
    %cst_47 = arith.constant 1.000000e+00 : f32
    %217 = vector.broadcast %cst_47 : f32 to vector<8x64xf32>
    %218 = arith.addf %217, %216 : vector<8x64xf32>
    %219 = arith.divf %217, %218 : vector<8x64xf32>
    %220 = vector.extract_strided_slice %213 {offsets = [0, 64], sizes = [8, 64], strides = [1, 1]} : vector<8x256xf32> to vector<8x64xf32>
    %221 = arith.negf %220 : vector<8x64xf32>
    %222 = math.exp %221 : vector<8x64xf32>
    %cst_48 = arith.constant 1.000000e+00 : f32
    %223 = vector.broadcast %cst_48 : f32 to vector<8x64xf32>
    %224 = arith.addf %223, %222 : vector<8x64xf32>
    %225 = arith.divf %223, %224 : vector<8x64xf32>
    %226 = vector.extract_strided_slice %213 {offsets = [0, 128], sizes = [8, 64], strides = [1, 1]} : vector<8x256xf32> to vector<8x64xf32>
    %227 = math.tanh %226 : vector<8x64xf32>
    %228 = vector.extract_strided_slice %213 {offsets = [0, 192], sizes = [8, 64], strides = [1, 1]} : vector<8x256xf32> to vector<8x64xf32>
    %229 = arith.negf %228 : vector<8x64xf32>
    %230 = math.exp %229 : vector<8x64xf32>
    %cst_49 = arith.constant 1.000000e+00 : f32
    %231 = vector.broadcast %cst_49 : f32 to vector<8x64xf32>
    %232 = arith.addf %231, %230 : vector<8x64xf32>
    %233 = arith.divf %231, %232 : vector<8x64xf32>
    %234 = arith.mulf %225, %203 : vector<8x64xf32>
    %235 = arith.mulf %219, %227 : vector<8x64xf32>
    %236 = arith.addf %234, %235 : vector<8x64xf32>
    %237 = math.tanh %236 : vector<8x64xf32>
    %238 = arith.mulf %233, %237 : vector<8x64xf32>
    %c7_i32 = arith.constant 7 : i32
    %c8_i32_50 = arith.constant 8 : i32
    %239 = arith.muli %c7_i32, %c8_i32_50 : i32
    %240 = tpu.assume_multiple %239, 8 : i32
    %241 = arith.index_cast %240 : i32 to index
    %c0_51 = arith.constant 0 : index
    %242 = vector.load %arg6[%241, %c0_51] : memref<64x256xbf16, #tpu.memory_space<vmem>>, vector<8x256xbf16>
    %243 = arith.extf %242 : vector<8x256xbf16> to vector<8x256xf32>
    %244 = arith.truncf %238 : vector<8x64xf32> to vector<8x64xbf16>
    %cst_52 = arith.constant dense<0.000000e+00> : vector<8x256xf32>
    %245 = tpu.matmul %244, %5, %cst_52 {dimension_numbers = #tpu.dot_dimension_numbers<[1], [0], [0], [1], [0, 0, 1, 1], [], []>} : vector<8x64xbf16>, vector<64x256xbf16>, vector<8x256xf32> -> vector<8x256xf32>
    %246 = arith.addf %243, %245 : vector<8x256xf32>
    %247 = vector.extract_strided_slice %246 {offsets = [0, 0], sizes = [8, 64], strides = [1, 1]} : vector<8x256xf32> to vector<8x64xf32>
    %248 = arith.negf %247 : vector<8x64xf32>
    %249 = math.exp %248 : vector<8x64xf32>
    %cst_53 = arith.constant 1.000000e+00 : f32
    %250 = vector.broadcast %cst_53 : f32 to vector<8x64xf32>
    %251 = arith.addf %250, %249 : vector<8x64xf32>
    %252 = arith.divf %250, %251 : vector<8x64xf32>
    %253 = vector.extract_strided_slice %246 {offsets = [0, 64], sizes = [8, 64], strides = [1, 1]} : vector<8x256xf32> to vector<8x64xf32>
    %254 = arith.negf %253 : vector<8x64xf32>
    %255 = math.exp %254 : vector<8x64xf32>
    %cst_54 = arith.constant 1.000000e+00 : f32
    %256 = vector.broadcast %cst_54 : f32 to vector<8x64xf32>
    %257 = arith.addf %256, %255 : vector<8x64xf32>
    %258 = arith.divf %256, %257 : vector<8x64xf32>
    %259 = vector.extract_strided_slice %246 {offsets = [0, 128], sizes = [8, 64], strides = [1, 1]} : vector<8x256xf32> to vector<8x64xf32>
    %260 = math.tanh %259 : vector<8x64xf32>
    %261 = vector.extract_strided_slice %246 {offsets = [0, 192], sizes = [8, 64], strides = [1, 1]} : vector<8x256xf32> to vector<8x64xf32>
    %262 = arith.negf %261 : vector<8x64xf32>
    %263 = math.exp %262 : vector<8x64xf32>
    %cst_55 = arith.constant 1.000000e+00 : f32
    %264 = vector.broadcast %cst_55 : f32 to vector<8x64xf32>
    %265 = arith.addf %264, %263 : vector<8x64xf32>
    %266 = arith.divf %264, %265 : vector<8x64xf32>
    %267 = arith.mulf %258, %236 : vector<8x64xf32>
    %268 = arith.mulf %252, %260 : vector<8x64xf32>
    %269 = arith.addf %267, %268 : vector<8x64xf32>
    %270 = math.tanh %269 : vector<8x64xf32>
    %271 = arith.mulf %266, %270 : vector<8x64xf32>
    %c8_i32_56 = arith.constant 8 : i32
    %272 = arith.truncf %271 : vector<8x64xf32> to vector<8x64xbf16>
    %c0_57 = arith.constant 0 : index
    %c0_58 = arith.constant 0 : index
    %273 = vector.load %arg3[%c0_57, %c0_58] : memref<64x128xbf16, #tpu.memory_space<vmem>>, vector<64x128xbf16>
    %cst_59 = arith.constant dense<0.000000e+00> : vector<8x128xf32>
    %274 = tpu.matmul %272, %273, %cst_59 {dimension_numbers = #tpu.dot_dimension_numbers<[1], [0], [0], [1], [0, 0, 1, 1], [], []>} : vector<8x64xbf16>, vector<64x128xbf16>, vector<8x128xf32> -> vector<8x128xf32>
    %c0_60 = arith.constant 0 : index
    %c0_61 = arith.constant 0 : index
    %275 = vector.load %arg4[%c0_60, %c0_61] : memref<1x128xf32, #tpu.memory_space<vmem>>, vector<1x128xf32>
    %276 = vector.broadcast %275 : vector<1x128xf32> to vector<8x128xf32>
    %277 = arith.addf %274, %276 : vector<8x128xf32>
    %c0_62 = arith.constant 0 : index
    %c0_63 = arith.constant 0 : index
    %278 = vector.load %arg5[%c0_62, %c0_63] : memref<8x128xf32, #tpu.memory_space<vmem>>, vector<8x128xf32>
    tpu.vector_store %arg5[%c0_62, %c0_63], %277 {strides = array<i32>} : memref<8x128xf32, #tpu.memory_space<vmem>>, vector<8x128xf32>,
    return
  }
}

</mosaic_0001>

<llo_original>
// kernel: tpu_custom_call.1
$region0: #{tpu_custom_call.1}
  #allocation0 [shape = 'u32[]', space=smem, size = 0x4, offset = 0x4, fixed_abs, tag = 'smem constant byte address 0x4 - core index']
  #allocation1 [shape = 'u32[144,128]{1,0:T(1,128)}', space=vmem, size = 0x12000, scoped, tag = 'internal scratch']
  #allocation2 [shape = 'bf16[64,256]{1,0:T(8,128)(2,1)}', space=vmem, size = 0x8000, scoped, tag = 'scratch operand']
  %s0 = inlined_call_operand.vmem [shape: bf16[64,32], index: 0, kind: input, shape index: {}]
  %s1 = inlined_call_operand.vmem [shape: bf16[32,256], index: 1, kind: input, shape index: {}]
  %s2 = inlined_call_operand.hbm [shape: bf16[64,256], index: 2, kind: input, shape index: {}]
  %s3 = inlined_call_operand.hbm [shape: bf16[64,128], index: 3, kind: input, shape index: {}]
  %s4 = inlined_call_operand.vmem [shape: f32[1,128], index: 4, kind: input, shape index: {}]
  %s5 = inlined_call_operand.hbm [shape: f32[8,128], index: 5, kind: output, shape index: {}]
  %s6 = sld [smem:[#allocation0]]
  $region38: #{tpu_custom_call.1} parent=0
    _
  %s8 = ssub.s32 1, %s6
  %s9 = scalar_select 0, %s8, %s6
  $region1: #{tpu_custom_call.1} parent=0
    #allocation3 [shape = 'u8[32768]{0}', space=vmem, size = 0x8000, scoped, tag = 'input window, operand 2, single buffered']
    #allocation4 [shape = 's32[1]{0}', space=sflag, size = 0x4, scoped, tag = 'scoped memory for tpu_custom_call.1']
    #allocation5 [shape = 's32[1]{0}', space=sflag, size = 0x4, scoped, tag = 'scoped memory for tpu_custom_call.1']
    #allocation6 [shape = 'u8[16384]{0}', space=vmem, size = 0x4000, scoped, tag = 'input window, operand 3, single buffered']
    #allocation7 [shape = 's32[1]{0}', space=sflag, size = 0x4, scoped, tag = 'scoped memory for tpu_custom_call.1']
    #allocation8 [shape = 'u8[4096]{0}', space=vmem, size = 0x1000, scoped, tag = 'output window, operand 0, single buffered']
    %10 = vsyncpa [#allocation4], 0
    %11 = vsyncpa [#allocation7], 0
    %12 = vsyncpa [#allocation5], 0
    // Predicated region
    $region2: #{tpu_custom_call.1} parent=1 // pred_check
      _
    $region3: #{tpu_custom_call.1} parent=1 // pred_check_branch
      %14 = sbr.rel (0) target = $region5
    $region4: #{tpu_custom_call.1} parent=1 // pred_region
      _
    $region5: #{tpu_custom_call.1} parent=1 // pred_fallthru
      _
    // Predicated region
    $region6: #{tpu_custom_call.1} parent=1 // pred_check
      _
    $region7: #{tpu_custom_call.1} parent=1 // pred_check_branch
      %16 = sbr.rel (0) target = $region9
    $region8: #{tpu_custom_call.1} parent=1 // pred_region
      _
    $region9: #{tpu_custom_call.1} parent=1 // pred_fallthru
      _
    // Predicated region
    $region10: #{tpu_custom_call.1} parent=1 // pred_check
      _
    $region11: #{tpu_custom_call.1} parent=1 // pred_check_branch
      %18 = sbr.rel (0) target = $region13
    $region12: #{tpu_custom_call.1} parent=1 // pred_region
      %s20 = ssub.s32 1024, 1024
      %21 = vsyncadd [#allocation4], %s20
      %s22 = sshll.u32 [#allocation3], 4
      %s23 = int_to_ptr.vmem [resolvable:$true] %s22
      %28 = dma.hbm_to_vmem [thread:$0]  %s2, 1024, %s23, [#allocation4], 128, 128, 8
    $region13: #{tpu_custom_call.1} parent=1 // pred_fallthru
      _
    // Predicated region
    $region14: #{tpu_custom_call.1} parent=1 // pred_check
      _
    $region15: #{tpu_custom_call.1} parent=1 // pred_check_branch
      %30 = sbr.rel (0) target = $region17
    $region16: #{tpu_custom_call.1} parent=1 // pred_region
      %s32 = ssub.s32 512, 512
      %33 = vsyncadd [#allocation7], %s32
      %s34 = sshll.u32 [#allocation6], 4
      %s35 = int_to_ptr.vmem [resolvable:$true] %s34
      %40 = dma.hbm_to_vmem [thread:$0]  %s3, 512, %s35, [#allocation7], 64, 64, 4
    $region17: #{tpu_custom_call.1} parent=1 // pred_fallthru
      _
    // Predicated region
    $region18: #{tpu_custom_call.1} parent=1 // pred_check
      _
    $region19: #{tpu_custom_call.1} parent=1 // pred_check_branch
      %42 = sbr.rel (0) target = $region21
    $region20: #{tpu_custom_call.1} parent=1 // pred_region
      _
    $region21: #{tpu_custom_call.1} parent=1 // pred_fallthru
      _
    // Predicated region
    $region22: #{tpu_custom_call.1} parent=1 // pred_check
      _
    $region23: #{tpu_custom_call.1} parent=1 // pred_check_branch
      %44 = sbr.rel (0) target = $region25
    $region24: #{tpu_custom_call.1} parent=1 // pred_region
      %45 = dma.done [#allocation4], 1024
    $region25: #{tpu_custom_call.1} parent=1 // pred_fallthru
      _
    // Predicated region
    $region26: #{tpu_custom_call.1} parent=1 // pred_check
      _
    $region27: #{tpu_custom_call.1} parent=1 // pred_check_branch
      %47 = sbr.rel (0) target = $region29
    $region28: #{tpu_custom_call.1} parent=1 // pred_region
      %48 = dma.done [#allocation7], 512
    $region29: #{tpu_custom_call.1} parent=1 // pred_fallthru
      _
    %v50 = vld [vmem:[%s0] sm:$0xf]
    %v51 = vld [vmem:[%s0 + $0x4] sm:$0xf]
    %v52 = vld [vmem:[%s0 + $0x8] sm:$0xf]
    %v53 = vld [vmem:[%s0 + $0xc] sm:$0xf]
    %v54 = vld [vmem:[%s0 + $0x10] sm:$0xf]
    %v55 = vld [vmem:[%s0 + $0x14] sm:$0xf]
    %v56 = vld [vmem:[%s0 + $0x18] sm:$0xf]
    %v57 = vld [vmem:[%s0 + $0x1c] sm:$0xf]
    %v58 = vld [vmem:[%s1] sm:$0xff]
    %v59 = vld [vmem:[%s1 + $0x8] sm:$0xff]
    %v60 = vld [vmem:[%s1 + $0x10] sm:$0xff]
    %v61 = vld [vmem:[%s1 + $0x18] sm:$0xff]
    %v70 = vunpack.c.l.b16 %v50
    %v71 = vunpack.c.l.b16 %v51
    %v72 = vunpack.c.l.b16 %v52
    %v73 = vunpack.c.l.b16 %v53
    %v74 = vunpack.c.l.b16 %v54
    %v75 = vunpack.c.l.b16 %v55
    %v76 = vunpack.c.l.b16 %v56
    %v77 = vunpack.c.l.b16 %v57
    %v78 = vpack.c.b16 %v71, %v70
    %v79 = vpack.c.b16 %v73, %v72
    %v80 = vpack.c.b16 %v75, %v74
    %v81 = vpack.c.b16 %v77, %v76
    %v86 = vunpack.c.l.b16 %v58
    %v87 = vunpack.c.h.b16 %v58
    %v88 = vunpack.c.l.b16 %v59
    %v89 = vunpack.c.h.b16 %v59
    %v90 = vunpack.c.l.b16 %v60
    %v91 = vunpack.c.h.b16 %v60
    %v92 = vunpack.c.l.b16 %v61
    %v93 = vunpack.c.h.b16 %v61
    %v94 = vpack.c.b16 %v88, %v86
    %v95 = vpack.c.b16 %v89, %v87
    %v96 = vpack.c.b16 %v92, %v90
    %v97 = vpack.c.b16 %v93, %v91
    %vm102 = vcmask 261120
    %v104 = vsel %vm102, %v78, 0
    %v107 = vsel %vm102, %v79, 0
    %v110 = vsel %vm102, %v80, 0
    %v113 = vsel %vm102, %v81, 0
    %115 = vmatprep.subr.bf16.mxu0 0
    %116 = vmatpush1.bf16.msra.mxu0 0
    %117 = vmatprep.subr.bf16.mxu0 0
    %118 = vmatpush1.bf16.msra.mxu0 0
    %119 = vmatprep.subr.bf16.mxu0 0
    %120 = vmatpush1.bf16.msra.mxu0 0
    %121 = vmatprep.subr.bf16.mxu0 0
    %122 = vmatpush1.bf16.msra.mxu0 0
    %123 = vmatprep.subr.bf16.mxu0 0
    %124 = vmatpush1.bf16.msra.mxu0 0
    %125 = vmatprep.subr.bf16.mxu0 0
    %126 = vmatpush1.bf16.msra.mxu0 0
    %127 = vmatprep.subr.bf16.mxu0 %v97
    %128 = vmatpush1.bf16.msra.mxu0 %v96
    %129 = vmatprep.subr.bf16.mxu0 %v95
    %130 = vmatpush1.bf16.msra.mxu0 %v94
    %131 = vmatprep.subr.bf16.mxu0 0
    %132 = vmatpush2.bf16.msra.mxu0 0
    %133 = vmatprep.subr.bf16.mxu0 0
    %134 = vmatpush2.bf16.msra.mxu0 0
    %135 = vmatprep.subr.bf16.mxu0 0
    %136 = vmatpush2.bf16.msra.mxu0 0
    %137 = vmatprep.subr.bf16.mxu0 0
    %138 = vmatpush2.bf16.msra.mxu0 0
    %139 = vmatprep.subr.bf16.mxu0 0
    %140 = vmatpush2.bf16.msra.mxu0 0
    %141 = vmatprep.subr.bf16.mxu0 0
    %142 = vmatpush2.bf16.msra.mxu0 0
    %143 = vmatprep.subr.bf16.mxu0 0
    %144 = vmatpush2.bf16.msra.mxu0 0
    %145 = vmatprep.subr.bf16.mxu0 0
    %146 = vmatpush2.bf16.msra.mxu0 0
    %147 = vmatprep.mubr.bf16.mxu0 0
    %148 = vmatmul.mubr.bf16.gmra.mxu0 %v104
    %v149 = vpop.f32.mrf.mxu0
    %v150 = vadd.f32 0.0, %v149
    %v151 = vpop.f32.mrf.mxu0
    %v152 = vadd.f32 0.0, %v151
    %v153 = vpop.f32.mrf.mxu0
    %v154 = vadd.f32 0.0, %v153
    %v155 = vpop.f32.mrf.mxu0
    %v156 = vadd.f32 0.0, %v155
    %157 = vmatprep.mubr.bf16.mxu0 0
    %158 = vmatmul.mubr.bf16.gmra.mxu0 %v107
    %v159 = vpop.f32.mrf.mxu0
    %v160 = vadd.f32 0.0, %v159
    %v161 = vpop.f32.mrf.mxu0
    %v162 = vadd.f32 0.0, %v161
    %v163 = vpop.f32.mrf.mxu0
    %v164 = vadd.f32 0.0, %v163
    %v165 = vpop.f32.mrf.mxu0
    %v166 = vadd.f32 0.0, %v165
    %167 = vmatprep.mubr.bf16.mxu0 0
    %168 = vmatmul.mubr.bf16.gmra.mxu0 %v110
    %v169 = vpop.f32.mrf.mxu0
    %v170 = vadd.f32 0.0, %v169
    %v171 = vpop.f32.mrf.mxu0
    %v172 = vadd.f32 0.0, %v171
    %v173 = vpop.f32.mrf.mxu0
    %v174 = vadd.f32 0.0, %v173
    %v175 = vpop.f32.mrf.mxu0
    %v176 = vadd.f32 0.0, %v175
    %177 = vmatprep.mubr.bf16.mxu0 0
    %178 = vmatmul.mubr.bf16.gmra.mxu0 %v113
    %v179 = vpop.f32.mrf.mxu0
    %v180 = vadd.f32 0.0, %v179
    %v181 = vpop.f32.mrf.mxu0
    %v182 = vadd.f32 0.0, %v181
    %v183 = vpop.f32.mrf.mxu0
    %v184 = vadd.f32 0.0, %v183
    %v185 = vpop.f32.mrf.mxu0
    %v186 = vadd.f32 0.0, %v185
    %187 = vdwg.mxu0
    %v188 = vpack.c.bf16 %v154, %v150
    %v189 = vpack.c.bf16 %v156, %v152
    %v190 = vpack.c.bf16 %v164, %v160
    %v191 = vpack.c.bf16 %v166, %v162
    %v192 = vpack.c.bf16 %v174, %v170
    %v193 = vpack.c.bf16 %v176, %v172
    %v194 = vpack.c.bf16 %v184, %v180
    %v195 = vpack.c.bf16 %v186, %v182
    %v204 = vunpack.c.l.b16 %v188
    %v205 = vunpack.c.l.b16 %v189
    %v206 = vunpack.c.h.b16 %v188
    %v207 = vunpack.c.h.b16 %v189
    %v208 = vunpack.c.l.b16 %v190
    %v209 = vunpack.c.l.b16 %v191
    %v210 = vunpack.c.h.b16 %v190
    %v211 = vunpack.c.h.b16 %v191
    %v212 = vunpack.c.l.b16 %v192
    %v213 = vunpack.c.l.b16 %v193
    %v214 = vunpack.c.h.b16 %v192
    %v215 = vunpack.c.h.b16 %v193
    %v216 = vunpack.c.l.b16 %v194
    %v217 = vunpack.c.l.b16 %v195
    %v218 = vunpack.c.h.b16 %v194
    %v219 = vunpack.c.h.b16 %v195
    %v220 = vpack.c.b16 %v205, %v204
    %v221 = vpack.c.b16 %v207, %v206
    %v222 = vpack.c.b16 %v209, %v208
    %v223 = vpack.c.b16 %v211, %v210
    %v224 = vpack.c.b16 %v213, %v212
    %v225 = vpack.c.b16 %v215, %v214
    %v226 = vpack.c.b16 %v217, %v216
    %v227 = vpack.c.b16 %v219, %v218
    %236 = vst [vmem:[#allocation2] sm:$0xff] %v220
    %237 = vst [vmem:[#allocation2 + $0x8] sm:$0xff] %v221
    %238 = vst [vmem:[#allocation2 + $0x10] sm:$0xff] %v222
    %239 = vst [vmem:[#allocation2 + $0x18] sm:$0xff] %v223
    %240 = vst [vmem:[#allocation2 + $0x20] sm:$0xff] %v224
    %241 = vst [vmem:[#allocation2 + $0x28] sm:$0xff] %v225
    %242 = vst [vmem:[#allocation2 + $0x30] sm:$0xff] %v226
    %243 = vst [vmem:[#allocation2 + $0x38] sm:$0xff] %v227
    %v244 = vld [vmem:[#allocation3] sm:$0xff]
    %v245 = vld [vmem:[#allocation3 + $0x8] sm:$0xff]
    %v246 = vld [vmem:[#allocation3 + $0x10] sm:$0xff]
    %v247 = vld [vmem:[#allocation3 + $0x18] sm:$0xff]
    %v248 = vld [vmem:[#allocation3 + $0x20] sm:$0xff]
    %v249 = vld [vmem:[#allocation3 + $0x28] sm:$0xff]
    %v250 = vld [vmem:[#allocation3 + $0x30] sm:$0xff]
    %v251 = vld [vmem:[#allocation3 + $0x38] sm:$0xff]
    %s252 = smul.u32 0, 2
    %s253 = smul.addr %s252, 4
    %s254 = scalar_lea.vmem [#allocation2], %s253
    %v255 = vld [vmem:[%s254] sm:$0xff]
    %v256 = vunpack.c.l.bf16 %v255
    %v257 = vunpack.c.h.bf16 %v255
    %v266 = vunpack.c.l.b16 %v244
    %v267 = vunpack.c.h.b16 %v244
    %v268 = vunpack.c.l.b16 %v245
    %v269 = vunpack.c.h.b16 %v245
    %v270 = vunpack.c.l.b16 %v246
    %v271 = vunpack.c.h.b16 %v246
    %v272 = vunpack.c.l.b16 %v247
    %v273 = vunpack.c.h.b16 %v247
    %v274 = vunpack.c.l.b16 %v248
    %v275 = vunpack.c.h.b16 %v248
    %v276 = vunpack.c.l.b16 %v249
    %v277 = vunpack.c.h.b16 %v249
    %v278 = vunpack.c.l.b16 %v250
    %v279 = vunpack.c.h.b16 %v250
    %v280 = vunpack.c.l.b16 %v251
    %v281 = vunpack.c.h.b16 %v251
    %v282 = vpack.c.b16 %v268, %v266
    %v283 = vpack.c.b16 %v269, %v267
    %v284 = vpack.c.b16 %v272, %v270
    %v285 = vpack.c.b16 %v273, %v271
    %v286 = vpack.c.b16 %v276, %v274
    %v287 = vpack.c.b16 %v277, %v275
    %v288 = vpack.c.b16 %v280, %v278
    %v289 = vpack.c.b16 %v281, %v279
    %vm298 = vcmask 523264
    %v300 = vsel %vm298, 0, 0
    %302 = vmatprep.subr.bf16.mxu0 0
    %303 = vmatpush1.bf16.msra.mxu0 0
    %304 = vmatprep.subr.bf16.mxu0 0
    %305 = vmatpush1.bf16.msra.mxu0 0
    %306 = vmatprep.subr.bf16.mxu0 0
    %307 = vmatpush1.bf16.msra.mxu0 0
    %308 = vmatprep.subr.bf16.mxu0 0
    %309 = vmatpush1.bf16.msra.mxu0 0
    %310 = vmatprep.subr.bf16.mxu0 %v289
    %311 = vmatpush1.bf16.msra.mxu0 %v288
    %312 = vmatprep.subr.bf16.mxu0 %v287
    %313 = vmatpush1.bf16.msra.mxu0 %v286
    %314 = vmatprep.subr.bf16.mxu0 %v285
    %315 = vmatpush1.bf16.msra.mxu0 %v284
    %316 = vmatprep.subr.bf16.mxu0 %v283
    %317 = vmatpush1.bf16.msra.mxu0 %v282
    %318 = vmatprep.subr.bf16.mxu0 0
    %319 = vmatpush2.bf16.msra.mxu0 0
    %320 = vmatprep.subr.bf16.mxu0 0
    %321 = vmatpush2.bf16.msra.mxu0 0
    %322 = vmatprep.subr.bf16.mxu0 0
    %323 = vmatpush2.bf16.msra.mxu0 0
    %324 = vmatprep.subr.bf16.mxu0 0
    %325 = vmatpush2.bf16.msra.mxu0 0
    %326 = vmatprep.subr.bf16.mxu0 0
    %327 = vmatpush2.bf16.msra.mxu0 0
    %328 = vmatprep.subr.bf16.mxu0 0
    %329 = vmatpush2.bf16.msra.mxu0 0
    %330 = vmatprep.subr.bf16.mxu0 0
    %331 = vmatpush2.bf16.msra.mxu0 0
    %332 = vmatprep.subr.bf16.mxu0 0
    %333 = vmatpush2.bf16.msra.mxu0 0
    %334 = vmatprep.mubr.bf16.mxu0 0
    %335 = vmatmul.mubr.bf16.gmra.mxu0 %v300
    %v336 = vpop.f32.mrf.mxu0
    %v337 = vadd.f32 0.0, %v336
    %v338 = vpop.f32.mrf.mxu0
    %v339 = vadd.f32 0.0, %v338
    %v340 = vpop.f32.mrf.mxu0
    %v341 = vpop.f32.mrf.mxu0
    %342 = vdwg.mxu0
    %v343 = vadd.f32 %v256, %v337
    %v344 = vadd.f32 %v257, %v339
    %v345 = vxor.u32 %v343, 2147483648
    %v346 = vmul.f32 %v345, 1.442695
    %v347 = vpow.pop %v346
    %v348 = vadd.f32 %v347, 1.0
    %v349 = vrcp.pop %v348
    %v350 = vmul.f32 1.0, %v349
    %v351 = vtanh.pop %v344
    %v352 = vxor.u32 %v344, 2147483648
    %v353 = vmul.f32 %v352, 1.442695
    %v354 = vpow.pop %v353
    %v355 = vadd.f32 %v354, 1.0
    %v356 = vrcp.pop %v355
    %v357 = vmul.f32 1.0, %v356
    %v358 = vmul.f32 %v350, 0.0
    %v359 = vmul.f32 %v350, %v351
    %361 = vrot.lane.b32.xlu0 %v359, 64
    %v362 = vpop.permute.xlu0 %361
    %v364 = vadd.f32 %v358, %v362
    %v365 = vtanh.pop %v364
    %v366 = vmul.f32 %v357, %v365
    %s367 = smul.u32 1, 2
    %s368 = smul.addr %s367, 4
    %s369 = scalar_lea.vmem [#allocation2], %s368
    %v370 = vld [vmem:[%s369] sm:$0xff]
    %v371 = vunpack.c.l.bf16 %v370
    %v372 = vunpack.c.h.bf16 %v370
    %v373 = vpack.c.bf16 %v366, %v366
    %375 = vrot.lane.b32.xlu0 %v373, 64
    %v376 = vpop.permute.xlu0 %375
    %v378 = vsel %vm298, %v376, 0
    %380 = vmatprep.subr.bf16.mxu0 0
    %381 = vmatpush1.bf16.msra.mxu0 0
    %382 = vmatprep.subr.bf16.mxu0 0
    %383 = vmatpush1.bf16.msra.mxu0 0
    %384 = vmatprep.subr.bf16.mxu0 0
    %385 = vmatpush1.bf16.msra.mxu0 0
    %386 = vmatprep.subr.bf16.mxu0 0
    %387 = vmatpush1.bf16.msra.mxu0 0
    %388 = vmatprep.subr.bf16.mxu0 %v289
    %389 = vmatpush1.bf16.msra.mxu0 %v288
    %390 = vmatprep.subr.bf16.mxu0 %v287
    %391 = vmatpush1.bf16.msra.mxu0 %v286
    %392 = vmatprep.subr.bf16.mxu0 %v285
    %393 = vmatpush1.bf16.msra.mxu0 %v284
    %394 = vmatprep.subr.bf16.mxu0 %v283
    %395 = vmatpush1.bf16.msra.mxu0 %v282
    %396 = vmatprep.subr.bf16.mxu0 0
    %397 = vmatpush2.bf16.msra.mxu0 0
    %398 = vmatprep.subr.bf16.mxu0 0
    %399 = vmatpush2.bf16.msra.mxu0 0
    %400 = vmatprep.subr.bf16.mxu0 0
    %401 = vmatpush2.bf16.msra.mxu0 0
    %402 = vmatprep.subr.bf16.mxu0 0
    %403 = vmatpush2.bf16.msra.mxu0 0
    %404 = vmatprep.subr.bf16.mxu0 0
    %405 = vmatpush2.bf16.msra.mxu0 0
    %406 = vmatprep.subr.bf16.mxu0 0
    %407 = vmatpush2.bf16.msra.mxu0 0
    %408 = vmatprep.subr.bf16.mxu0 0
    %409 = vmatpush2.bf16.msra.mxu0 0
    %410 = vmatprep.subr.bf16.mxu0 0
    %411 = vmatpush2.bf16.msra.mxu0 0
    %412 = vmatprep.mubr.bf16.mxu0 0
    %413 = vmatmul.mubr.bf16.gmra.mxu0 %v378
    %v414 = vpop.f32.mrf.mxu0
    %v415 = vadd.f32 0.0, %v414
    %v416 = vpop.f32.mrf.mxu0
    %v417 = vadd.f32 0.0, %v416
    %v418 = vpop.f32.mrf.mxu0
    %v419 = vpop.f32.mrf.mxu0
    %420 = vdwg.mxu0
    %v421 = vadd.f32 %v371, %v415
    %v422 = vadd.f32 %v372, %v417
    %v423 = vxor.u32 %v421, 2147483648
    %v424 = vmul.f32 %v423, 1.442695
    %v425 = vpow.pop %v424
    %v426 = vadd.f32 %v425, 1.0
    %v427 = vrcp.pop %v426
    %v428 = vmul.f32 1.0, %v427
    %v429 = vtanh.pop %v422
    %v430 = vxor.u32 %v422, 2147483648
    %v431 = vmul.f32 %v430, 1.442695
    %v432 = vpow.pop %v431
    %v433 = vadd.f32 %v432, 1.0
    %v434 = vrcp.pop %v433
    %v435 = vmul.f32 1.0, %v434
    %v436 = vmul.f32 %v428, %v364
    %v437 = vmul.f32 %v428, %v429
    %439 = vrot.lane.b32.xlu0 %v437, 64
    %v440 = vpop.permute.xlu0 %439
    %v442 = vadd.f32 %v436, %v440
    %v443 = vtanh.pop %v442
    %v444 = vmul.f32 %v435, %v443
    %s445 = smul.u32 2, 2
    %s446 = smul.addr %s445, 4
    %s447 = scalar_lea.vmem [#allocation2], %s446
    %v448 = vld [vmem:[%s447] sm:$0xff]
    %v449 = vunpack.c.l.bf16 %v448
    %v450 = vunpack.c.h.bf16 %v448
    %v451 = vpack.c.bf16 %v444, %v444
    %453 = vrot.lane.b32.xlu0 %v451, 64
    %v454 = vpop.permute.xlu0 %453
    %v456 = vsel %vm298, %v454, 0
    %458 = vmatprep.subr.bf16.mxu0 0
    %459 = vmatpush1.bf16.msra.mxu0 0
    %460 = vmatprep.subr.bf16.mxu0 0
    %461 = vmatpush1.bf16.msra.mxu0 0
    %462 = vmatprep.subr.bf16.mxu0 0
    %463 = vmatpush1.bf16.msra.mxu0 0
    %464 = vmatprep.subr.bf16.mxu0 0
    %465 = vmatpush1.bf16.msra.mxu0 0
    %466 = vmatprep.subr.bf16.mxu0 %v289
    %467 = vmatpush1.bf16.msra.mxu0 %v288
    %468 = vmatprep.subr.bf16.mxu0 %v287
    %469 = vmatpush1.bf16.msra.mxu0 %v286
    %470 = vmatprep.subr.bf16.mxu0 %v285
    %471 = vmatpush1.bf16.msra.mxu0 %v284
    %472 = vmatprep.subr.bf16.mxu0 %v283
    %473 = vmatpush1.bf16.msra.mxu0 %v282
    %474 = vmatprep.subr.bf16.mxu0 0
    %475 = vmatpush2.bf16.msra.mxu0 0
    %476 = vmatprep.subr.bf16.mxu0 0
    %477 = vmatpush2.bf16.msra.mxu0 0
    %478 = vmatprep.subr.bf16.mxu0 0
    %479 = vmatpush2.bf16.msra.mxu0 0
    %480 = vmatprep.subr.bf16.mxu0 0
    %481 = vmatpush2.bf16.msra.mxu0 0
    %482 = vmatprep.subr.bf16.mxu0 0
    %483 = vmatpush2.bf16.msra.mxu0 0
    %484 = vmatprep.subr.bf16.mxu0 0
    %485 = vmatpush2.bf16.msra.mxu0 0
    %486 = vmatprep.subr.bf16.mxu0 0
    %487 = vmatpush2.bf16.msra.mxu0 0
    %488 = vmatprep.subr.bf16.mxu0 0
    %489 = vmatpush2.bf16.msra.mxu0 0
    %490 = vmatprep.mubr.bf16.mxu0 0
    %491 = vmatmul.mubr.bf16.gmra.mxu0 %v456
    %v492 = vpop.f32.mrf.mxu0
    %v493 = vadd.f32 0.0, %v492
    %v494 = vpop.f32.mrf.mxu0
    %v495 = vadd.f32 0.0, %v494
    %v496 = vpop.f32.mrf.mxu0
    %v497 = vpop.f32.mrf.mxu0
    %498 = vdwg.mxu0
    %v499 = vadd.f32 %v449, %v493
    %v500 = vadd.f32 %v450, %v495
    %v501 = vxor.u32 %v499, 2147483648
    %v502 = vmul.f32 %v501, 1.442695
    %v503 = vpow.pop %v502
    %v504 = vadd.f32 %v503, 1.0
    %v505 = vrcp.pop %v504
    %v506 = vmul.f32 1.0, %v505
    %v507 = vtanh.pop %v500
    %v508 = vxor.u32 %v500, 2147483648
    %v509 = vmul.f32 %v508, 1.442695
    %v510 = vpow.pop %v509
    %v511 = vadd.f32 %v510, 1.0
    %v512 = vrcp.pop %v511
    %v513 = vmul.f32 1.0, %v512
    %v514 = vmul.f32 %v506, %v442
    %v515 = vmul.f32 %v506, %v507
    %517 = vrot.lane.b32.xlu0 %v515, 64
    %v518 = vpop.permute.xlu0 %517
    %v520 = vadd.f32 %v514, %v518
    %v521 = vtanh.pop %v520
    %v522 = vmul.f32 %v513, %v521
    %s523 = smul.u32 3, 2
    %s524 = smul.addr %s523, 4
    %s525 = scalar_lea.vmem [#allocation2], %s524
    %v526 = vld [vmem:[%s525] sm:$0xff]
    %v527 = vunpack.c.l.bf16 %v526
    %v528 = vunpack.c.h.bf16 %v526
    %v529 = vpack.c.bf16 %v522, %v522
    %531 = vrot.lane.b32.xlu0 %v529, 64
    %v532 = vpop.permute.xlu0 %531
    %v534 = vsel %vm298, %v532, 0
    %536 = vmatprep.subr.bf16.mxu0 0
    %537 = vmatpush1.bf16.msra.mxu0 0
    %538 = vmatprep.subr.bf16.mxu0 0
    %539 = vmatpush1.bf16.msra.mxu0 0
    %540 = vmatprep.subr.bf16.mxu0 0
    %541 = vmatpush1.bf16.msra.mxu0 0
    %542 = vmatprep.subr.bf16.mxu0 0
    %543 = vmatpush1.bf16.msra.mxu0 0
    %544 = vmatprep.subr.bf16.mxu0 %v289
    %545 = vmatpush1.bf16.msra.mxu0 %v288
    %546 = vmatprep.subr.bf16.mxu0 %v287
    %547 = vmatpush1.bf16.msra.mxu0 %v286
    %548 = vmatprep.subr.bf16.mxu0 %v285
    %549 = vmatpush1.bf16.msra.mxu0 %v284
    %550 = vmatprep.subr.bf16.mxu0 %v283
    %551 = vmatpush1.bf16.msra.mxu0 %v282
    %552 = vmatprep.subr.bf16.mxu0 0
    %553 = vmatpush2.bf16.msra.mxu0 0
    %554 = vmatprep.subr.bf16.mxu0 0
    %555 = vmatpush2.bf16.msra.mxu0 0
    %556 = vmatprep.subr.bf16.mxu0 0
    %557 = vmatpush2.bf16.msra.mxu0 0
    %558 = vmatprep.subr.bf16.mxu0 0
    %559 = vmatpush2.bf16.msra.mxu0 0
    %560 = vmatprep.subr.bf16.mxu0 0
    %561 = vmatpush2.bf16.msra.mxu0 0
    %562 = vmatprep.subr.bf16.mxu0 0
    %563 = vmatpush2.bf16.msra.mxu0 0
    %564 = vmatprep.subr.bf16.mxu0 0
    %565 = vmatpush2.bf16.msra.mxu0 0
    %566 = vmatprep.subr.bf16.mxu0 0
    %567 = vmatpush2.bf16.msra.mxu0 0
    %568 = vmatprep.mubr.bf16.mxu0 0
    %569 = vmatmul.mubr.bf16.gmra.mxu0 %v534
    %v570 = vpop.f32.mrf.mxu0
    %v571 = vadd.f32 0.0, %v570
    %v572 = vpop.f32.mrf.mxu0
    %v573 = vadd.f32 0.0, %v572
    %v574 = vpop.f32.mrf.mxu0
    %v575 = vpop.f32.mrf.mxu0
    %576 = vdwg.mxu0
    %v577 = vadd.f32 %v527, %v571
    %v578 = vadd.f32 %v528, %v573
    %v579 = vxor.u32 %v577, 2147483648
    %v580 = vmul.f32 %v579, 1.442695
    %v581 = vpow.pop %v580
    %v582 = vadd.f32 %v581, 1.0
    %v583 = vrcp.pop %v582
    %v584 = vmul.f32 1.0, %v583
    %v585 = vtanh.pop %v578
    %v586 = vxor.u32 %v578, 2147483648
    %v587 = vmul.f32 %v586, 1.442695
    %v588 = vpow.pop %v587
    %v589 = vadd.f32 %v588, 1.0
    %v590 = vrcp.pop %v589
    %v591 = vmul.f32 1.0, %v590
    %v592 = vmul.f32 %v584, %v520
    %v593 = vmul.f32 %v584, %v585
    %595 = vrot.lane.b32.xlu0 %v593, 64
    %v596 = vpop.permute.xlu0 %595
    %v598 = vadd.f32 %v592, %v596
    %v599 = vtanh.pop %v598
    %v600 = vmul.f32 %v591, %v599
    %s601 = smul.u32 4, 2
    %s602 = smul.addr %s601, 4
    %s603 = scalar_lea.vmem [#allocation2], %s602
    %v604 = vld [vmem:[%s603] sm:$0xff]
    %v605 = vunpack.c.l.bf16 %v604
    %v606 = vunpack.c.h.bf16 %v604
    %v607 = vpack.c.bf16 %v600, %v600
    %609 = vrot.lane.b32.xlu0 %v607, 64
    %v610 = vpop.permute.xlu0 %609
    %v612 = vsel %vm298, %v610, 0
    %614 = vmatprep.subr.bf16.mxu0 0
    %615 = vmatpush1.bf16.msra.mxu0 0
    %616 = vmatprep.subr.bf16.mxu0 0
    %617 = vmatpush1.bf16.msra.mxu0 0
    %618 = vmatprep.subr.bf16.mxu0 0
    %619 = vmatpush1.bf16.msra.mxu0 0
    %620 = vmatprep.subr.bf16.mxu0 0
    %621 = vmatpush1.bf16.msra.mxu0 0
    %622 = vmatprep.subr.bf16.mxu0 %v289
    %623 = vmatpush1.bf16.msra.mxu0 %v288
    %624 = vmatprep.subr.bf16.mxu0 %v287
    %625 = vmatpush1.bf16.msra.mxu0 %v286
    %626 = vmatprep.subr.bf16.mxu0 %v285
    %627 = vmatpush1.bf16.msra.mxu0 %v284
    %628 = vmatprep.subr.bf16.mxu0 %v283
    %629 = vmatpush1.bf16.msra.mxu0 %v282
    %630 = vmatprep.subr.bf16.mxu0 0
    %631 = vmatpush2.bf16.msra.mxu0 0
    %632 = vmatprep.subr.bf16.mxu0 0
    %633 = vmatpush2.bf16.msra.mxu0 0
    %634 = vmatprep.subr.bf16.mxu0 0
    %635 = vmatpush2.bf16.msra.mxu0 0
    %636 = vmatprep.subr.bf16.mxu0 0
    %637 = vmatpush2.bf16.msra.mxu0 0
    %638 = vmatprep.subr.bf16.mxu0 0
    %639 = vmatpush2.bf16.msra.mxu0 0
    %640 = vmatprep.subr.bf16.mxu0 0
    %641 = vmatpush2.bf16.msra.mxu0 0
    %642 = vmatprep.subr.bf16.mxu0 0
    %643 = vmatpush2.bf16.msra.mxu0 0
    %644 = vmatprep.subr.bf16.mxu0 0
    %645 = vmatpush2.bf16.msra.mxu0 0
    %646 = vmatprep.mubr.bf16.mxu0 0
    %647 = vmatmul.mubr.bf16.gmra.mxu0 %v612
    %v648 = vpop.f32.mrf.mxu0
    %v649 = vadd.f32 0.0, %v648
    %v650 = vpop.f32.mrf.mxu0
    %v651 = vadd.f32 0.0, %v650
    %v652 = vpop.f32.mrf.mxu0
    %v653 = vpop.f32.mrf.mxu0
    %654 = vdwg.mxu0
    %v655 = vadd.f32 %v605, %v649
    %v656 = vadd.f32 %v606, %v651
    %v657 = vxor.u32 %v655, 2147483648
    %v658 = vmul.f32 %v657, 1.442695
    %v659 = vpow.pop %v658
    %v660 = vadd.f32 %v659, 1.0
    %v661 = vrcp.pop %v660
    %v662 = vmul.f32 1.0, %v661
    %v663 = vtanh.pop %v656
    %v664 = vxor.u32 %v656, 2147483648
    %v665 = vmul.f32 %v664, 1.442695
    %v666 = vpow.pop %v665
    %v667 = vadd.f32 %v666, 1.0
    %v668 = vrcp.pop %v667
    %v669 = vmul.f32 1.0, %v668
    %v670 = vmul.f32 %v662, %v598
    %v671 = vmul.f32 %v662, %v663
    %673 = vrot.lane.b32.xlu0 %v671, 64
    %v674 = vpop.permute.xlu0 %673
    %v676 = vadd.f32 %v670, %v674
    %v677 = vtanh.pop %v676
    %v678 = vmul.f32 %v669, %v677
    %s679 = smul.u32 5, 2
    %s680 = smul.addr %s679, 4
    %s681 = scalar_lea.vmem [#allocation2], %s680
    %v682 = vld [vmem:[%s681] sm:$0xff]
    %v683 = vunpack.c.l.bf16 %v682
    %v684 = vunpack.c.h.bf16 %v682
    %v685 = vpack.c.bf16 %v678, %v678
    %687 = vrot.lane.b32.xlu0 %v685, 64
    %v688 = vpop.permute.xlu0 %687
    %v690 = vsel %vm298, %v688, 0
    %692 = vmatprep.subr.bf16.mxu0 0
    %693 = vmatpush1.bf16.msra.mxu0 0
    %694 = vmatprep.subr.bf16.mxu0 0
    %695 = vmatpush1.bf16.msra.mxu0 0
    %696 = vmatprep.subr.bf16.mxu0 0
    %697 = vmatpush1.bf16.msra.mxu0 0
    %698 = vmatprep.subr.bf16.mxu0 0
    %699 = vmatpush1.bf16.msra.mxu0 0
    %700 = vmatprep.subr.bf16.mxu0 %v289
    %701 = vmatpush1.bf16.msra.mxu0 %v288
    %702 = vmatprep.subr.bf16.mxu0 %v287
    %703 = vmatpush1.bf16.msra.mxu0 %v286
    %704 = vmatprep.subr.bf16.mxu0 %v285
    %705 = vmatpush1.bf16.msra.mxu0 %v284
    %706 = vmatprep.subr.bf16.mxu0 %v283
    %707 = vmatpush1.bf16.msra.mxu0 %v282
    %708 = vmatprep.subr.bf16.mxu0 0
    %709 = vmatpush2.bf16.msra.mxu0 0
    %710 = vmatprep.subr.bf16.mxu0 0
    %711 = vmatpush2.bf16.msra.mxu0 0
    %712 = vmatprep.subr.bf16.mxu0 0
    %713 = vmatpush2.bf16.msra.mxu0 0
    %714 = vmatprep.subr.bf16.mxu0 0
    %715 = vmatpush2.bf16.msra.mxu0 0
    %716 = vmatprep.subr.bf16.mxu0 0
    %717 = vmatpush2.bf16.msra.mxu0 0
    %718 = vmatprep.subr.bf16.mxu0 0
    %719 = vmatpush2.bf16.msra.mxu0 0
    %720 = vmatprep.subr.bf16.mxu0 0
    %721 = vmatpush2.bf16.msra.mxu0 0
    %722 = vmatprep.subr.bf16.mxu0 0
    %723 = vmatpush2.bf16.msra.mxu0 0
    %724 = vmatprep.mubr.bf16.mxu0 0
    %725 = vmatmul.mubr.bf16.gmra.mxu0 %v690
    %v726 = vpop.f32.mrf.mxu0
    %v727 = vadd.f32 0.0, %v726
    %v728 = vpop.f32.mrf.mxu0
    %v729 = vadd.f32 0.0, %v728
    %v730 = vpop.f32.mrf.mxu0
    %v731 = vpop.f32.mrf.mxu0
    %732 = vdwg.mxu0
    %v733 = vadd.f32 %v683, %v727
    %v734 = vadd.f32 %v684, %v729
    %v735 = vxor.u32 %v733, 2147483648
    %v736 = vmul.f32 %v735, 1.442695
    %v737 = vpow.pop %v736
    %v738 = vadd.f32 %v737, 1.0
    %v739 = vrcp.pop %v738
    %v740 = vmul.f32 1.0, %v739
    %v741 = vtanh.pop %v734
    %v742 = vxor.u32 %v734, 2147483648
    %v743 = vmul.f32 %v742, 1.442695
    %v744 = vpow.pop %v743
    %v745 = vadd.f32 %v744, 1.0
    %v746 = vrcp.pop %v745
    %v747 = vmul.f32 1.0, %v746
    %v748 = vmul.f32 %v740, %v676
    %v749 = vmul.f32 %v740, %v741
    %751 = vrot.lane.b32.xlu0 %v749, 64
    %v752 = vpop.permute.xlu0 %751
    %v754 = vadd.f32 %v748, %v752
    %v755 = vtanh.pop %v754
    %v756 = vmul.f32 %v747, %v755
    %s757 = smul.u32 6, 2
    %s758 = smul.addr %s757, 4
    %s759 = scalar_lea.vmem [#allocation2], %s758
    %v760 = vld [vmem:[%s759] sm:$0xff]
    %v761 = vunpack.c.l.bf16 %v760
    %v762 = vunpack.c.h.bf16 %v760
    %v763 = vpack.c.bf16 %v756, %v756
    %765 = vrot.lane.b32.xlu0 %v763, 64
    %v766 = vpop.permute.xlu0 %765
    %v768 = vsel %vm298, %v766, 0
    %770 = vmatprep.subr.bf16.mxu0 0
    %771 = vmatpush1.bf16.msra.mxu0 0
    %772 = vmatprep.subr.bf16.mxu0 0
    %773 = vmatpush1.bf16.msra.mxu0 0
    %774 = vmatprep.subr.bf16.mxu0 0
    %775 = vmatpush1.bf16.msra.mxu0 0
    %776 = vmatprep.subr.bf16.mxu0 0
    %777 = vmatpush1.bf16.msra.mxu0 0
    %778 = vmatprep.subr.bf16.mxu0 %v289
    %779 = vmatpush1.bf16.msra.mxu0 %v288
    %780 = vmatprep.subr.bf16.mxu0 %v287
    %781 = vmatpush1.bf16.msra.mxu0 %v286
    %782 = vmatprep.subr.bf16.mxu0 %v285
    %783 = vmatpush1.bf16.msra.mxu0 %v284
    %784 = vmatprep.subr.bf16.mxu0 %v283
    %785 = vmatpush1.bf16.msra.mxu0 %v282
    %786 = vmatprep.subr.bf16.mxu0 0
    %787 = vmatpush2.bf16.msra.mxu0 0
    %788 = vmatprep.subr.bf16.mxu0 0
    %789 = vmatpush2.bf16.msra.mxu0 0
    %790 = vmatprep.subr.bf16.mxu0 0
    %791 = vmatpush2.bf16.msra.mxu0 0
    %792 = vmatprep.subr.bf16.mxu0 0
    %793 = vmatpush2.bf16.msra.mxu0 0
    %794 = vmatprep.subr.bf16.mxu0 0
    %795 = vmatpush2.bf16.msra.mxu0 0
    %796 = vmatprep.subr.bf16.mxu0 0
    %797 = vmatpush2.bf16.msra.mxu0 0
    %798 = vmatprep.subr.bf16.mxu0 0
    %799 = vmatpush2.bf16.msra.mxu0 0
    %800 = vmatprep.subr.bf16.mxu0 0
    %801 = vmatpush2.bf16.msra.mxu0 0
    %802 = vmatprep.mubr.bf16.mxu0 0
    %803 = vmatmul.mubr.bf16.gmra.mxu0 %v768
    %v804 = vpop.f32.mrf.mxu0
    %v805 = vadd.f32 0.0, %v804
    %v806 = vpop.f32.mrf.mxu0
    %v807 = vadd.f32 0.0, %v806
    %v808 = vpop.f32.mrf.mxu0
    %v809 = vpop.f32.mrf.mxu0
    %810 = vdwg.mxu0
    %v811 = vadd.f32 %v761, %v805
    %v812 = vadd.f32 %v762, %v807
    %v813 = vxor.u32 %v811, 2147483648
    %v814 = vmul.f32 %v813, 1.442695
    %v815 = vpow.pop %v814
    %v816 = vadd.f32 %v815, 1.0
    %v817 = vrcp.pop %v816
    %v818 = vmul.f32 1.0, %v817
    %v819 = vtanh.pop %v812
    %v820 = vxor.u32 %v812, 2147483648
    %v821 = vmul.f32 %v820, 1.442695
    %v822 = vpow.pop %v821
    %v823 = vadd.f32 %v822, 1.0
    %v824 = vrcp.pop %v823
    %v825 = vmul.f32 1.0, %v824
    %v826 = vmul.f32 %v818, %v754
    %v827 = vmul.f32 %v818, %v819
    %829 = vrot.lane.b32.xlu0 %v827, 64
    %v830 = vpop.permute.xlu0 %829
    %v832 = vadd.f32 %v826, %v830
    %v833 = vtanh.pop %v832
    %v834 = vmul.f32 %v825, %v833
    %s835 = smul.u32 7, 2
    %s836 = smul.addr %s835, 4
    %s837 = scalar_lea.vmem [#allocation2], %s836
    %v838 = vld [vmem:[%s837] sm:$0xff]
    %v839 = vunpack.c.l.bf16 %v838
    %v840 = vunpack.c.h.bf16 %v838
    %v841 = vpack.c.bf16 %v834, %v834
    %843 = vrot.lane.b32.xlu0 %v841, 64
    %v844 = vpop.permute.xlu0 %843
    %v846 = vsel %vm298, %v844, 0
    %848 = vmatprep.subr.bf16.mxu0 0
    %849 = vmatpush1.bf16.msra.mxu0 0
    %850 = vmatprep.subr.bf16.mxu0 0
    %851 = vmatpush1.bf16.msra.mxu0 0
    %852 = vmatprep.subr.bf16.mxu0 0
    %853 = vmatpush1.bf16.msra.mxu0 0
    %854 = vmatprep.subr.bf16.mxu0 0
    %855 = vmatpush1.bf16.msra.mxu0 0
    %856 = vmatprep.subr.bf16.mxu0 %v289
    %857 = vmatpush1.bf16.msra.mxu0 %v288
    %858 = vmatprep.subr.bf16.mxu0 %v287
    %859 = vmatpush1.bf16.msra.mxu0 %v286
    %860 = vmatprep.subr.bf16.mxu0 %v285
    %861 = vmatpush1.bf16.msra.mxu0 %v284
    %862 = vmatprep.subr.bf16.mxu0 %v283
    %863 = vmatpush1.bf16.msra.mxu0 %v282
    %864 = vmatprep.subr.bf16.mxu0 0
    %865 = vmatpush2.bf16.msra.mxu0 0
    %866 = vmatprep.subr.bf16.mxu0 0
    %867 = vmatpush2.bf16.msra.mxu0 0
    %868 = vmatprep.subr.bf16.mxu0 0
    %869 = vmatpush2.bf16.msra.mxu0 0
    %870 = vmatprep.subr.bf16.mxu0 0
    %871 = vmatpush2.bf16.msra.mxu0 0
    %872 = vmatprep.subr.bf16.mxu0 0
    %873 = vmatpush2.bf16.msra.mxu0 0
    %874 = vmatprep.subr.bf16.mxu0 0
    %875 = vmatpush2.bf16.msra.mxu0 0
    %876 = vmatprep.subr.bf16.mxu0 0
    %877 = vmatpush2.bf16.msra.mxu0 0
    %878 = vmatprep.subr.bf16.mxu0 0
    %879 = vmatpush2.bf16.msra.mxu0 0
    %880 = vmatprep.mubr.bf16.mxu0 0
    %881 = vmatmul.mubr.bf16.gmra.mxu0 %v846
    %v882 = vpop.f32.mrf.mxu0
    %v883 = vadd.f32 0.0, %v882
    %v884 = vpop.f32.mrf.mxu0
    %v885 = vadd.f32 0.0, %v884
    %v886 = vpop.f32.mrf.mxu0
    %v887 = vpop.f32.mrf.mxu0
    %888 = vdwg.mxu0
    %v889 = vadd.f32 %v839, %v883
    %v890 = vadd.f32 %v840, %v885
    %v891 = vxor.u32 %v889, 2147483648
    %v892 = vmul.f32 %v891, 1.442695
    %v893 = vpow.pop %v892
    %v894 = vadd.f32 %v893, 1.0
    %v895 = vrcp.pop %v894
    %v896 = vmul.f32 1.0, %v895
    %v897 = vtanh.pop %v890
    %v898 = vxor.u32 %v890, 2147483648
    %v899 = vmul.f32 %v898, 1.442695
    %v900 = vpow.pop %v899
    %v901 = vadd.f32 %v900, 1.0
    %v902 = vrcp.pop %v901
    %v903 = vmul.f32 1.0, %v902
    %v904 = vmul.f32 %v896, %v832
    %v905 = vmul.f32 %v896, %v897
    %907 = vrot.lane.b32.xlu0 %v905, 64
    %v908 = vpop.permute.xlu0 %907
    %v910 = vadd.f32 %v904, %v908
    %v911 = vtanh.pop %v910
    %v912 = vmul.f32 %v903, %v911
    %v913 = vpack.c.bf16 %v912, %v912
    %v914 = vld [vmem:[#allocation6] sm:$0xf]
    %v915 = vld [vmem:[#allocation6 + $0x4] sm:$0xf]
    %v916 = vld [vmem:[#allocation6 + $0x8] sm:$0xf]
    %v917 = vld [vmem:[#allocation6 + $0xc] sm:$0xf]
    %v918 = vld [vmem:[#allocation6 + $0x10] sm:$0xf]
    %v919 = vld [vmem:[#allocation6 + $0x14] sm:$0xf]
    %v920 = vld [vmem:[#allocation6 + $0x18] sm:$0xf]
    %v921 = vld [vmem:[#allocation6 + $0x1c] sm:$0xf]
    %v922 = vld [vmem:[%s4] sm:$0x1]
    %v924 = vlaneseq
    %v925 = vshrl.u32 %v924, 7
    %v926 = vsub.s32 0, %v925
    %v927 = vrot.slane %v922, %v926
    %930 = vrot.lane.b32.xlu0 %v913, 64
    %v931 = vpop.permute.xlu0 %930
    %v940 = vunpack.c.l.b16 %v914
    %v941 = vunpack.c.l.b16 %v915
    %v942 = vunpack.c.l.b16 %v916
    %v943 = vunpack.c.l.b16 %v917
    %v944 = vunpack.c.l.b16 %v918
    %v945 = vunpack.c.l.b16 %v919
    %v946 = vunpack.c.l.b16 %v920
    %v947 = vunpack.c.l.b16 %v921
    %v948 = vpack.c.b16 %v941, %v940
    %v949 = vpack.c.b16 %v943, %v942
    %v950 = vpack.c.b16 %v945, %v944
    %v951 = vpack.c.b16 %v947, %v946
    %v957 = vsel %vm298, %v931, 0
    %959 = vmatprep.subr.bf16.mxu0 0
    %960 = vmatpush1.bf16.msra.mxu0 0
    %961 = vmatprep.subr.bf16.mxu0 0
    %962 = vmatpush1.bf16.msra.mxu0 0
    %963 = vmatprep.subr.bf16.mxu0 0
    %964 = vmatpush1.bf16.msra.mxu0 0
    %965 = vmatprep.subr.bf16.mxu0 0
    %966 = vmatpush1.bf16.msra.mxu0 0
    %967 = vmatprep.subr.bf16.mxu0 0
    %968 = vmatpush1.bf16.msra.mxu0 %v951
    %969 = vmatprep.subr.bf16.mxu0 0
    %970 = vmatpush1.bf16.msra.mxu0 %v950
    %971 = vmatprep.subr.bf16.mxu0 0
    %972 = vmatpush1.bf16.msra.mxu0 %v949
    %973 = vmatprep.subr.bf16.mxu0 0
    %974 = vmatpush1.bf16.msra.mxu0 %v948
    %975 = vmatprep.subr.bf16.mxu0 0
    %976 = vmatpush2.bf16.msra.mxu0 0
    %977 = vmatprep.subr.bf16.mxu0 0
    %978 = vmatpush2.bf16.msra.mxu0 0
    %979 = vmatprep.subr.bf16.mxu0 0
    %980 = vmatpush2.bf16.msra.mxu0 0
    %981 = vmatprep.subr.bf16.mxu0 0
    %982 = vmatpush2.bf16.msra.mxu0 0
    %983 = vmatprep.subr.bf16.mxu0 0
    %984 = vmatpush2.bf16.msra.mxu0 0
    %985 = vmatprep.subr.bf16.mxu0 0
    %986 = vmatpush2.bf16.msra.mxu0 0
    %987 = vmatprep.subr.bf16.mxu0 0
    %988 = vmatpush2.bf16.msra.mxu0 0
    %989 = vmatprep.subr.bf16.mxu0 0
    %990 = vmatpush2.bf16.msra.mxu0 0
    %991 = vmatprep.mubr.bf16.mxu0 0
    %992 = vmatmul.mubr.bf16.gmra.mxu0 %v957
    %v993 = vpop.f32.mrf.mxu0
    %v994 = vadd.f32 %v927, %v993
    %v995 = vpop.f32.mrf.mxu0
    %v996 = vpop.f32.mrf.mxu0
    %v997 = vpop.f32.mrf.mxu0
    %998 = vdwg.mxu0
    %999 = vst [vmem:[#allocation8] sm:$0xff] %v994
    // Predicated region
    $region30: #{tpu_custom_call.1} parent=1 // pred_check
      _
    $region31: #{tpu_custom_call.1} parent=1 // pred_check_branch
      %1001 = sbr.rel (0) target = $region33
    $region32: #{tpu_custom_call.1} parent=1 // pred_region
      %s1003 = ssub.s32 128, 128
      %1004 = vsyncadd [#allocation5], %s1003
      %s1006 = sshll.u32 [#allocation8], 4
      %s1007 = int_to_ptr.vmem [resolvable:$true] %s1006
      %1009 = dma.vmem_to_hbm [thread:$0]  %s1007, 128, %s5, [#allocation5]
    $region33: #{tpu_custom_call.1} parent=1 // pred_fallthru
      _
    // Predicated region
    $region34: #{tpu_custom_call.1} parent=1 // pred_check
      _
    $region35: #{tpu_custom_call.1} parent=1 // pred_check_branch
      %1011 = sbr.rel (0) target = $region37
    $region36: #{tpu_custom_call.1} parent=1 // pred_region
      %1012 = dma.done [#allocation5], 128
    $region37: #{tpu_custom_call.1} parent=1 // pred_fallthru
      _
    %1013 = vsyncpa [#allocation4], 1
    %1014 = vsyncpa [#allocation7], 1
    %1015 = vsyncpa [#allocation5], 1

</llo_original>
